<compile_context>
chip_gen: v7x
topology: tpu7x:2x2x1
jax: 0.10.0
libtpu: 0.0.40
codegen_flags: <defaults>
</compile_context>

<pallas_src>
import functools
import math

import jax
import jax.numpy as jnp
from jax.experimental import pallas as pl
from jax.experimental.pallas import tpu as pltpu


# ----------------------------------------------------------------------------
# P table (init-time, matches the PyTorch __init__ exactly, kept in float32).
# ----------------------------------------------------------------------------
def make_positional_table(max_len, num_hiddens):
    pos = jnp.arange(max_len, dtype=jnp.float32)[:, None]                 # (L, 1)
    freq = jnp.power(
        10000.0,
        jnp.arange(0, num_hiddens, 2, dtype=jnp.float32) / num_hiddens)  # (ceil(D/2),)
    angles = pos / freq                                                   # (L, ceil(D/2))
    table = jnp.zeros((max_len, num_hiddens), jnp.float32)
    table = table.at[:, 0::2].set(jnp.sin(angles))
    table = table.at[:, 1::2].set(jnp.cos(angles)[:, : num_hiddens // 2])
    return table


# ----------------------------------------------------------------------------
# Kernels.
#   seed_ref : SMEM (1,) int32 scalar-prefetch (only used by the PRNG variant)
#   p_ref    : (t_tiles, D) float32 resident positional table
#   x_ref    : (bb, bt, D) input tile
#   o_ref    : (bb, bt, D) output tile
# The positional rows for this tile are sliced in-kernel from the resident
# P block; the add runs in float32 and is cast once on store.
# ----------------------------------------------------------------------------
def _pe_rows(p_ref, bt):
    start = pl.program_id(1) * bt
    return p_ref[pl.ds(start, bt), :]                     # (bt, D) float32


def _dropout(y, bits_u32, threshold, scale):
    keep = bits_u32 >= jnp.uint32(threshold)              # P(keep) = 1 - dropout
    return jnp.where(keep, y * jnp.float32(scale), jnp.float32(0.0))


def _pe_kernel(seed_ref, p_ref, x_ref, o_ref, *, bt):
    del seed_ref
    y = x_ref[...].astype(jnp.float32) + _pe_rows(p_ref, bt)[None, :, :]
    o_ref[...] = y.astype(o_ref.dtype)


def _pe_kernel_prng(seed_ref, p_ref, x_ref, o_ref, *, bt, threshold, scale):
    y = x_ref[...].astype(jnp.float32) + _pe_rows(p_ref, bt)[None, :, :]
    # Per-tile deterministic seed so "parallel" tiles stay reproducible.
    tile = pl.program_id(0) * pl.num_programs(1) + pl.program_id(1)
    pltpu.prng_seed(seed_ref[0] + tile)
    bits = pltpu.prng_random_bits(y.shape)
    if bits.dtype != jnp.uint32:
        bits = pltpu.bitcast(bits, jnp.uint32)
    o_ref[...] = _dropout(y, bits, threshold, scale).astype(o_ref.dtype)


def _pe_kernel_bits(seed_ref, p_ref, x_ref, bits_ref, o_ref, *, bt, threshold, scale):
    del seed_ref
    y = x_ref[...].astype(jnp.float32) + _pe_rows(p_ref, bt)[None, :, :]
    o_ref[...] = _dropout(y, bits_ref[...], threshold, scale).astype(o_ref.dtype)


# ----------------------------------------------------------------------------
# Wrapper.
# ----------------------------------------------------------------------------
def positional_encoding(x, p_table, *, dropout=0.0, training=False, seed=0,
                        target_block_bytes=2 << 20):
    """dropout(x + P[:T]) with PyTorch inverted-dropout semantics.

    x: (B, T, D).  p_table: (max_len, D) float32.  Returns (B, T, D) in x.dtype.
    """
    B, T, D = x.shape
    max_len, d_p = p_table.shape
    assert d_p == D and T <= max_len
    orig_T, orig_D = T, D

    p_used = p_table[:T].astype(jnp.float32)               # only rows we need, f32

    # --- Lane-dense folding: pack g consecutive positions into one row so the
    #     last dim is a multiple of 128 (unmasked vst). No-op when D % 128 == 0.
    g = 128 // math.gcd(D, 128)
    if g > 1:
        t_pad = pl.cdiv(T, g) * g
        if t_pad != T:
            x = jnp.pad(x, ((0, 0), (0, t_pad - T), (0, 0)))
            p_used = jnp.pad(p_used, ((0, t_pad - T), (0, 0)))
        x = x.reshape(B, t_pad // g, g * D)
        p_used = p_used.reshape(t_pad // g, g * D)
        T, D = t_pad // g, g * D

    itemsize = x.dtype.itemsize
    row_bytes = D * itemsize
    sub_mult = {4: 8, 2: 16, 1: 32}.get(itemsize, 8)        # sublane multiple per dtype

    # --- VMEM-budgeted tile selection (x block ~ target_block_bytes) ---------
    bt_cap = max(1, target_block_bytes // max(1, B * row_bytes))
    if bt_cap >= T:
        bt = T                                              # full extent: always legal
    else:
        bt = min(T, max(sub_mult, (bt_cap // sub_mult) * sub_mult))
    nt = pl.cdiv(T, bt)

    bb = B
    while bb > 1 and bb * bt * row_bytes > target_block_bytes:
        bb = (bb + 1) // 2                                  # shrink batch tile if needed
    if nt * pl.cdiv(B, bb) == 1 and B > 1:                  # keep both v7x cores busy
        bb = (B + 1) // 2
    nb = pl.cdiv(B, bb)

    # Pad P rows so the in-kernel pl.ds slice never runs past the resident block
    # (the last x tile may be partial; Pallas masks its HBM writeback).
    t_tiles = nt * bt
    if t_tiles != T:
        p_used = jnp.pad(p_used, ((0, t_tiles - T), (0, 0)))

    apply_dropout = bool(training) and float(dropout) > 0.0
    threshold = min(int(round(float(dropout) * (1 << 32))), (1 << 32) - 1)
    scale = 1.0 / (1.0 - float(dropout)) if apply_dropout else 1.0
    # pltpu.prng_* has no CPU/interpret lowering -> only use it on real TPUs.
    use_onchip_prng = apply_dropout and jax.default_backend() == "tpu"

    p_spec = pl.BlockSpec((t_tiles, D), lambda b, t, s: (0, 0))     # resident, one DMA
    x_spec = pl.BlockSpec((bb, bt, D), lambda b, t, s: (b, t, 0))
    o_spec = pl.BlockSpec((bb, bt, D), lambda b, t, s: (b, t, 0))

    seed_arr = jnp.asarray(seed, dtype=jnp.int32).reshape(1)
    inputs = [seed_arr, p_used, x]
    in_specs = [p_spec, x_spec]

    bits_bytes = 0
    if not apply_dropout:
        kernel = functools.partial(_pe_kernel, bt=bt)
    elif use_onchip_prng:
        kernel = functools.partial(_pe_kernel_prng, bt=bt,
                                   threshold=threshold, scale=scale)
    else:
        kernel = functools.partial(_pe_kernel_bits, bt=bt,
                                   threshold=threshold, scale=scale)
        bits = jax.random.bits(jax.random.PRNGKey(seed), x.shape, jnp.uint32)
        inputs.append(bits)
        in_specs.append(pl.BlockSpec((bb, bt, D), lambda b, t, s: (b, t, 0)))
        bits_bytes = 2 * bb * bt * D * 4                    # double-buffered bits stream

    # VMEM budget: x + out (double-buffered) + resident P (+ optional bits).
    blk = bb * bt * D * itemsize
    est = 4 * blk + t_tiles * D * 4 + bits_bytes
    vmem_limit = int(min(max(2 * est, 16 << 20), 48 << 20))

    out = pl.pallas_call(
        kernel,
        out_shape=jax.ShapeDtypeStruct((B, T, D), x.dtype),
        grid_spec=pltpu.PrefetchScalarGridSpec(
            num_scalar_prefetch=1,                          # seed -> SMEM
            grid=(nb, nt),
            in_specs=in_specs,
            out_specs=o_spec,
        ),
        compiler_params=pltpu.CompilerParams(
            dimension_semantics=("parallel", "parallel"),   # independent tiles
            vmem_limit_bytes=vmem_limit),
    )(*inputs)

    if g > 1:
        out = out.reshape(B, T * g, orig_D)[:, :orig_T, :]
    return out


if __name__ == "__main__":
    max_len = 1000

    # --- 1) Eval-mode check (dropout inactive), small odd-D shape: exercises the
    #        lane-dense fold (D=32 -> g=4 -> D'=128) and the batch grid axis.
    B, T, D = 2, 8, 32
    p_table = make_positional_table(max_len, D)
    x = jax.random.normal(jax.random.PRNGKey(0), (B, T, D), jnp.float32)

    out_eval = jax.block_until_ready(
        positional_encoding(x, p_table, dropout=0.1, training=False))
    ref = x + p_table[None, :T, :]
    assert out_eval.shape == (B, T, D)
    assert jnp.allclose(out_eval, ref, atol=1e-5, rtol=1e-5)

    # --- 2) Training-mode (fused dropout), D=128, small block budget so the
    #        sequence grid has several tiles.
    B2, T2, D2 = 2, 64, 128
    p_table2 = make_positional_table(max_len, D2)
    x2 = jax.random.normal(jax.random.PRNGKey(1), (B2, T2, D2), jnp.float32)

    out_train = jax.block_until_ready(
        positional_encoding(x2, p_table2, dropout=0.1, training=True,
                            seed=123, target_block_bytes=16 * 1024))
    ref2 = (x2 + p_table2[None, :T2, :]) / (1.0 - 0.1)
    assert out_train.shape == (B2, T2, D2)
    # Every element is either dropped (0) or the correctly scaled reference value.
    ok = jnp.isclose(out_train, ref2, atol=1e-5, rtol=1e-5) | (out_train == 0.0)
    assert bool(jnp.all(ok))

    print("KERNEL_OK")
</pallas_src>

<mosaic_0001>
module attributes {stable_mosaic.version = 11 : i64} {
  func.func @_pe_kernel(%arg0: i32, %arg1: i32, %arg2: memref<1xi32, #tpu.memory_space<smem>>, %arg3: memref<2x128xf32, #tpu.memory_space<vmem>>, %arg4: memref<1x2x128xf32, #tpu.memory_space<vmem>>, %arg5: memref<1x2x128xf32, #tpu.memory_space<vmem>>) attributes {dimension_semantics = [#tpu.dimension_semantics<parallel>, #tpu.dimension_semantics<parallel>], iteration_bounds = array<i64: 2, 1>, scalar_prefetch = 1 : i64, scratch_operands = 0 : i64, tpu.core_type = #tpu.core_type<tc>, window_params = [{pipeline_mode = #tpu.pipeline_mode<synchronous>, transform_indices = @transform_0, window_bounds = array<i64: 2, 128>}, {transform_indices = @transform_1, window_bounds = array<i64: 1, 2, 128>}, {transform_indices = @transform_2, window_bounds = array<i64: 1, 2, 128>}]} {
    %c0 = arith.constant 0 : index
    %c0_0 = arith.constant 0 : index
    %c0_1 = arith.constant 0 : index
    %0 = vector.load %arg4[%c0, %c0_0, %c0_1] : memref<1x2x128xf32, #tpu.memory_space<vmem>>, vector<1x2x128xf32>
    %c2_i32 = arith.constant 2 : i32
    %1 = arith.muli %arg1, %c2_i32 : i32
    %2 = arith.index_cast %1 : i32 to index
    %c0_2 = arith.constant 0 : index
    %3 = vector.load %arg3[%2, %c0_2] : memref<2x128xf32, #tpu.memory_space<vmem>>, vector<2x128xf32>
    %4 = vector.shape_cast %3 : vector<2x128xf32> to vector<1x2x128xf32>
    %5 = arith.addf %0, %4 : vector<1x2x128xf32>
    %c0_3 = arith.constant 0 : index
    %c0_4 = arith.constant 0 : index
    %c0_5 = arith.constant 0 : index
    %6 = vector.load %arg5[%c0_3, %c0_4, %c0_5] : memref<1x2x128xf32, #tpu.memory_space<vmem>>, vector<1x2x128xf32>
    tpu.vector_store %arg5[%c0_3, %c0_4, %c0_5], %5 {strides = array<i32>} : memref<1x2x128xf32, #tpu.memory_space<vmem>>, vector<1x2x128xf32>,
    return
  }
  func.func @transform_0(%arg0: i32, %arg1: i32, %arg2: memref<1xi32, #tpu.memory_space<smem>>) -> (i32, i32) {
    %c0_i32 = arith.constant 0 : i32
    %c0_i32_0 = arith.constant 0 : i32
    %c0_i32_1 = arith.constant 0 : i32
    return %c0_i32, %c0_i32_0 : i32, i32
  }
  func.func @transform_1(%arg0: i32, %arg1: i32, %arg2: memref<1xi32, #tpu.memory_space<smem>>) -> (i32, i32, i32) {
    %c0_i32 = arith.constant 0 : i32
    %c0_i32_0 = arith.constant 0 : i32
    return %arg0, %arg1, %c0_i32 : i32, i32, i32
  }
  func.func @transform_2(%arg0: i32, %arg1: i32, %arg2: memref<1xi32, #tpu.memory_space<smem>>) -> (i32, i32, i32) {
    %c0_i32 = arith.constant 0 : i32
    %c0_i32_0 = arith.constant 0 : i32
    return %arg0, %arg1, %c0_i32 : i32, i32, i32
  }
}

</mosaic_0001>

<llo_original>
// kernel: tpu_custom_call.1
$region0: #{tpu_custom_call.1}
  #allocation0 [shape = 'u32[]', space=smem, size = 0x4, offset = 0x4, fixed_abs, tag = 'smem constant byte address 0x4 - core index']
  #allocation1 [shape = 'u32[144,128]{1,0:T(1,128)}', space=vmem, size = 0x12000, scoped, tag = 'internal scratch']
  #allocation2 [shape = 's32[1]{0}', space=sflag, size = 0x4, scoped, tag = 'scoped memory for tpu_custom_call.1']
  #allocation3 [shape = 's32[1]{0:T(128)S(6)}', space=smem, size = 0x200, scoped, tag = 'prefetched SMEM operand 0']
  %s0 = inlined_call_operand.<no memory space> [shape: s32[1], index: 0, kind: input, shape index: {}]
  %s1 = inlined_call_operand.vmem [shape: f32[2,128], index: 1, kind: input, shape index: {}]
  %s2 = inlined_call_operand.vmem [shape: f32[2,2,128], index: 2, kind: input, shape index: {}]
  %s3 = inlined_call_operand.hbm [shape: f32[2,2,128], index: 3, kind: output, shape index: {}]
  %s4 = sld [smem:[#allocation0]]
  $region41: #{tpu_custom_call.1} parent=0
    _
  %s6 = ssub.s32 1, %s4
  %s7 = scalar_select 0, %s6, %s4
  %8 = sst [smem:[#allocation3]] %s0
  $region1: #{tpu_custom_call.1} parent=0
    #allocation4 [shape = 'u8[2048]{0}', space=vmem, size = 0x800, scoped, tag = 'output window, operand 0']
    #allocation5 [shape = 's32[2]{0}', space=sflag, size = 0x8, scoped, tag = 'scoped memory for tpu_custom_call.1']
    %9 = vsyncpa [#allocation5], 0
    %s10 = scalar_lea.sflag [#allocation5], 1
    %11 = vsyncpa %s10, 0
    loop: start=0, step=1, limit=4
    $region2: #{tpu_custom_call.1} parent=1 // loop_pre_header
      _
    $region3: #{tpu_custom_call.1} parent=1 // loop_header
      %s13 = sphi 0, %s17
      %p14 = scmp.ge.s32.totalorder %s13, 4
      %s20 = sphi 0, %s32
      %s21 = sphi 0, %s28
      %s22 = sphi 0, %s20
      %s23 = sphi 0, %s21
      %s24 = sphi 0, %s22
      %s25 = sphi 0, %s23
      %s33 = sphi 0, %s33
      %s35 = sphi 0, %s33
      %s36 = sphi 0, %s35
      %s50 = sphi 0, %s36
      %s58 = sphi 0, %s60
      %s61 = sphi 0, %s58
      %s62 = sphi 0, %s61
      %s78 = sphi 0, %s62
      %s86 = sphi 0, %s88
      %s89 = sphi 0, %s86
      %s90 = sphi 0, %s89
      %s106 = sphi 0, %s90
    $region4: #{tpu_custom_call.1} parent=1 // loop_header_branch
      %16 = sbr.rel (%p14) target = $region8
    $region5: #{tpu_custom_call.1} parent=1 // loop_body
      %s18 = ssub.s32 %s13, 1
      %s19 = ssub.s32 %s13, 2
      %s26 = sadd.s32 1, %s21
      %p27 = scmp.ge.s32.totalorder %s26, 1
      %s28 = scalar_select %p27, 0, %s26
      %s29 = sadd.s32 1, %s20
      %s30 = scalar_select %p27, %s29, %s20
      %p31 = scmp.ge.s32.totalorder %s30, 2
      %s32 = scalar_select %p31, 0, %s30
      %s34 = sadd.s32 %s33, 1
      %p37 = scmp.eq.s32.totalorder %s13, 1
      %p38 = scmp.ne.s32.totalorder %s33, %s35
      %p39 = scmp.eq.s32.totalorder %s13, 0
      %p40 = por %p38, %p39
      %p41 = scmp.ne.s32.totalorder %s33, %s35
      %p42 = scmp.eq.s32.totalorder %s18, 1
      %p43 = por %p41, %p42
      %p44 = scmp.ne.s32.totalorder %s35, %s36
      %p45 = scmp.eq.s32.totalorder %s18, 0
      %p46 = por %p44, %p45
      %p47 = scmp.ne.s32.totalorder %s35, %s36
      %p48 = scmp.eq.s32.totalorder %s19, 1
      %p49 = por %p47, %p48
      %p51 = scmp.ne.s32.totalorder %s36, %s50
      %p52 = scmp.eq.s32.totalorder %s19, 0
      %p53 = por %p51, %p52
      %s54 = ssub.s32 %s20, %s32
      %s55 = ssub.s32 %s21, %s28
      %s56 = sor.u32 %s54, %s55
      %p57 = scmp.eq.s32.totalorder %s56, 0
      %s59 = sadd.s32 %s58, 1
      %s60 = scalar_select %p57, %s58, %s59
      %p63 = pneg %p57
      %p64 = scmp.eq.s32.totalorder %s13, 1
      %p65 = por %p63, %p64
      %p66 = scmp.ne.s32.totalorder %s58, %s61
      %p67 = scmp.eq.s32.totalorder %s13, 0
      %p68 = por %p66, %p67
      %p69 = scmp.ne.s32.totalorder %s58, %s61
      %p70 = scmp.eq.s32.totalorder %s18, 1
      %p71 = por %p69, %p70
      %p72 = scmp.ne.s32.totalorder %s61, %s62
      %p73 = scmp.eq.s32.totalorder %s18, 0
      %p74 = por %p72, %p73
      %p75 = scmp.ne.s32.totalorder %s61, %s62
      %p76 = scmp.eq.s32.totalorder %s19, 1
      %p77 = por %p75, %p76
      %p79 = scmp.ne.s32.totalorder %s62, %s78
      %p80 = scmp.eq.s32.totalorder %s19, 0
      %p81 = por %p79, %p80
      %s82 = ssub.s32 %s20, %s32
      %s83 = ssub.s32 %s21, %s28
      %s84 = sor.u32 %s82, %s83
      %p85 = scmp.eq.s32.totalorder %s84, 0
      %s87 = sadd.s32 %s86, 1
      %s88 = scalar_select %p85, %s86, %s87
      %p91 = pneg %p85
      %p92 = scmp.eq.s32.totalorder %s13, 1
      %p93 = por %p91, %p92
      %p94 = scmp.ne.s32.totalorder %s86, %s89
      %p95 = scmp.eq.s32.totalorder %s13, 0
      %p96 = por %p94, %p95
      %p97 = scmp.ne.s32.totalorder %s86, %s89
      %p98 = scmp.eq.s32.totalorder %s18, 1
      %p99 = por %p97, %p98
      %p100 = scmp.ne.s32.totalorder %s89, %s90
      %p101 = scmp.eq.s32.totalorder %s18, 0
      %p102 = por %p100, %p101
      %p103 = scmp.ne.s32.totalorder %s89, %s90
      %p104 = scmp.eq.s32.totalorder %s19, 1
      %p105 = por %p103, %p104
      %p107 = scmp.ne.s32.totalorder %s90, %s106
      %p108 = scmp.eq.s32.totalorder %s19, 0
      %p109 = por %p107, %p108
      %p110 = scmp.le.s32.totalorder 1, %s13
      %p111 = scmp.lt.s32.totalorder %s13, 3
      %p112 = pnand %p110, %p111
      %p113 = pneg %p112
      // Predicated region
      $region9: #{tpu_custom_call.1} parent=5 // pred_check
        _
      $region10: #{tpu_custom_call.1} parent=5 // pred_check_branch
        %115 = sbr.rel (%p112) target = $region12
      $region11: #{tpu_custom_call.1} parent=5 // pred_region
        %s116 = ssub.s32 %s13, 1
        // Predicated region
        $region13: #{tpu_custom_call.1} parent=11 // pred_check
          %p117 = pneg %p46
        $region14: #{tpu_custom_call.1} parent=11 // pred_check_branch
          %119 = sbr.rel (%p117) target = $region16
        $region15: #{tpu_custom_call.1} parent=11 // pred_region
          _
        $region16: #{tpu_custom_call.1} parent=11 // pred_fallthru
          _
      $region12: #{tpu_custom_call.1} parent=5 // pred_fallthru
        _
      %p120 = scmp.lt.s32.totalorder %s13, 2
      // Predicated region
      $region17: #{tpu_custom_call.1} parent=5 // pred_check
        %p121 = pneg %p120
      $region18: #{tpu_custom_call.1} parent=5 // pred_check_branch
        %123 = sbr.rel (%p121) target = $region20
      $region19: #{tpu_custom_call.1} parent=5 // pred_region
        // Predicated region
        $region21: #{tpu_custom_call.1} parent=19 // pred_check
          %p124 = pneg %p68
        $region22: #{tpu_custom_call.1} parent=19 // pred_check_branch
          %126 = sbr.rel (%p124) target = $region24
        $region23: #{tpu_custom_call.1} parent=19 // pred_region
          %p127 = scmp.lt.s32.totalorder %s20, 1
          %s128 = scalar_select %p127, %s20, 1
          %p129 = scmp.lt.s32.totalorder %s21, 0
          %s130 = scalar_select %p129, %s21, 0
          %s131 = sadd.s32 %s130, %s128
          %s132 = smul.addr %s131, 2
          %s133 = scalar_lea.vmem %s2, %s132
        $region24: #{tpu_custom_call.1} parent=19 // pred_fallthru
          _
      $region20: #{tpu_custom_call.1} parent=5 // pred_fallthru
        _
      %p134 = scmp.le.s32.totalorder 1, %s13
      %p135 = scmp.lt.s32.totalorder %s13, 3
      %p136 = pnand %p134, %p135
      %p137 = pneg %p136
      // Predicated region
      $region25: #{tpu_custom_call.1} parent=5 // pred_check
        _
      $region26: #{tpu_custom_call.1} parent=5 // pred_check_branch
        %139 = sbr.rel (%p136) target = $region28
      $region27: #{tpu_custom_call.1} parent=5 // pred_region
        %s140 = ssub.s32 %s13, 1
        %p141 = pneg %p46
        %p142 = pneg %p43
        %p143 = scmp.lt.s32.totalorder %s22, 1
        %s144 = scalar_select %p143, %s22, 1
        %p145 = scmp.lt.s32.totalorder %s23, 0
        %s146 = scalar_select %p145, %s23, 0
        %s147 = sadd.s32 %s146, %s144
        %s148 = smul.addr %s147, 2
        %s149 = scalar_lea.vmem %s2, %s148
        %p150 = pneg %p74
        %p151 = pneg %p71
        %p152 = pneg %p102
        %p153 = pneg %p99
        %s154 = sand.u32 %s89, 1
        %s155 = scalar_lea.sflag [#allocation5], %s154
        %s156 = sand.u32 %s89, 1
        %s157 = smul.addr %s156, 2
        %s158 = scalar_lea.vmem [#allocation4], %s157
        %p159 = scmp.lt.s32.totalorder %s22, 1
        %s160 = scalar_select %p159, %s22, 1
        %p161 = scmp.lt.s32.totalorder %s23, 0
        %s162 = scalar_select %p161, %s23, 0
        %s163 = sadd.s32 %s162, %s160
        %s164 = smul.addr %s163, 2
        %s165 = scalar_lea.vmem %s2, %s164
        %v166 = vld [vmem:[%s165] sm:$0x3]
        %s167 = smul.u32 %s23, 2
        %s168 = scalar_lea.vmem %s1, %s167
        %v169 = vld [vmem:[%s168] sm:$0x3]
        %v170 = vadd.f32 %v166, %v169
        %171 = vst [vmem:[%s158] sm:$0x3] %v170
        %s172 = sand.u32 %s89, 1
        %s173 = scalar_lea.sflag [#allocation5], %s172
        %s174 = sand.u32 %s89, 1
        %s175 = smul.addr %s174, 2
        %s176 = scalar_lea.vmem [#allocation4], %s175
        // Predicated region
        $region29: #{tpu_custom_call.1} parent=27 // pred_check
          %p177 = pneg %p99
        $region30: #{tpu_custom_call.1} parent=27 // pred_check_branch
          %179 = sbr.rel (%p177) target = $region32
        $region31: #{tpu_custom_call.1} parent=27 // pred_region
          %s181 = ssub.s32 32, 32
          %182 = vsyncadd %s173, %s181
          %s183 = sadd.s32 %s23, %s22
          %s184 = smul.addr %s183, 32
          %s185 = scalar_lea.hbm %s3, %s184
          %s187 = sshll.u32 %s176, 4
          %s188 = int_to_ptr.vmem [resolvable:$true] %s187
          %190 = dma.vmem_to_hbm [thread:$0]  %s188, 32, %s185, %s173
        $region32: #{tpu_custom_call.1} parent=27 // pred_fallthru
          _
      $region28: #{tpu_custom_call.1} parent=5 // pred_fallthru
        _
      %p191 = scmp.le.s32.totalorder 2, %s13
      // Predicated region
      $region33: #{tpu_custom_call.1} parent=5 // pred_check
        %p192 = pneg %p191
      $region34: #{tpu_custom_call.1} parent=5 // pred_check_branch
        %194 = sbr.rel (%p192) target = $region36
      $region35: #{tpu_custom_call.1} parent=5 // pred_region
        %s195 = ssub.s32 %s13, 2
        // Predicated region
        $region37: #{tpu_custom_call.1} parent=35 // pred_check
          %p196 = pneg %p105
        $region38: #{tpu_custom_call.1} parent=35 // pred_check_branch
          %198 = sbr.rel (%p196) target = $region40
        $region39: #{tpu_custom_call.1} parent=35 // pred_region
          %s199 = sand.u32 %s90, 1
          %s200 = scalar_lea.sflag [#allocation5], %s199
          %s201 = sand.u32 %s90, 1
          %s202 = smul.addr %s201, 2
          %s203 = scalar_lea.vmem [#allocation4], %s202
          %204 = dma.done %s200, 32
        $region40: #{tpu_custom_call.1} parent=35 // pred_fallthru
          _
      $region36: #{tpu_custom_call.1} parent=5 // pred_fallthru
        _
    $region6: #{tpu_custom_call.1} parent=1 // loop_footer
      %s17 = sadd.s32 1, %s13
    $region7: #{tpu_custom_call.1} parent=1 // loop_footer_branch
      %12 = sbr.rel target = $region3
    $region8: #{tpu_custom_call.1} parent=1 // loop_exit
      _
    %205 = vsyncpa [#allocation5], 1
    %s206 = scalar_lea.sflag [#allocation5], 1
    %207 = vsyncpa %s206, 1

</llo_original>
